<compile_context>
chip_gen: v6e
topology: v6e:2x2x1
jax: 0.10.0
libtpu: 0.0.40
codegen_flags: <defaults>
</compile_context>

<pallas_src>
import functools

import jax
import jax.numpy as jnp
from jax.experimental import pallas as pl
from jax.experimental.pallas import tpu as pltpu

BF16_SUBLANE = 16  # bf16 packs two rows per sublane -> native (16, 128) tile


def _round_up(n, m):
    return ((n + m - 1) // m) * m


def dqn_kernel(x_ref, w1_ref, b1_ref, w2_ref, b2_ref, w3_ref, b3_ref, o_ref):
    # Layer 1: bf16 matmul on the MXU (K=9 is padded internally), f32 accumulate;
    # bias + ReLU on the VPU in f32.
    h1 = jnp.dot(x_ref[...], w1_ref[...], preferred_element_type=jnp.float32)
    h1 = jnp.maximum(h1 + b1_ref[...], 0.0)
    # Layer 2.
    h2 = jnp.dot(h1.astype(jnp.bfloat16), w2_ref[...],
                 preferred_element_type=jnp.float32)
    h2 = jnp.maximum(h2 + b2_ref[...], 0.0)
    # Layer 3: narrow (d_out-wide) output, stored directly in f32.
    out = jnp.dot(h2.astype(jnp.bfloat16), w3_ref[...],
                  preferred_element_type=jnp.float32)
    o_ref[...] = (out + b3_ref[...]).astype(o_ref.dtype)


def prepare_params(params):
    """One-time weight prep (hoisted out of the forward): bf16 weights, f32 row biases."""
    w1, b1, w2, b2, w3, b3 = params
    return (
        w1.astype(jnp.bfloat16),                       # [d_in, 128]
        b1.astype(jnp.float32).reshape(1, -1),         # [1, 128]
        w2.astype(jnp.bfloat16),                       # [128, 256]
        b2.astype(jnp.float32).reshape(1, -1),         # [1, 256]
        w3.astype(jnp.bfloat16),                       # [256, d_out]
        b3.astype(jnp.float32).reshape(1, -1),         # [1, d_out]
    )


@functools.partial(jax.jit, static_argnames=("tb",))
def dqn_forward(x, prepared_params, *, tb=512):
    """x: [B, input_dim] float32. prepared_params: output of prepare_params()."""
    w1, b1, w2, b2, w3, b3 = prepared_params
    B, d_in = x.shape
    h1_dim = w1.shape[1]          # 128
    h2_dim = w2.shape[1]          # 256
    d_out = w3.shape[1]

    # Batch tile: multiple of 16 (bf16 sublane packing), capped at `tb`, and chosen so
    # there are >= 2 grid tiles whenever the batch allows it (v7x megacore sharding).
    b16 = _round_up(B, BF16_SUBLANE)
    TB = min(tb, b16)
    if b16 > BF16_SUBLANE and _round_up(B, TB) // TB < 2:
        TB = max(BF16_SUBLANE, _round_up(b16 // 2, BF16_SUBLANE))
    B_pad = _round_up(B, TB)
    grid = (B_pad // TB,)

    # Only batch-pad + bf16-cast the activations; weights arrive pre-prepared.
    xp = jnp.zeros((B_pad, d_in), jnp.bfloat16).at[:B, :].set(x.astype(jnp.bfloat16))

    flops = 2 * B_pad * (d_in * h1_dim + h1_dim * h2_dim + h2_dim * d_out)
    bytes_accessed = (
        xp.size * 2                                      # bf16 x stream
        + (w1.size + w2.size + w3.size) * 2              # bf16 weights (resident)
        + (b1.size + b2.size + b3.size) * 4              # f32 biases
        + B_pad * d_out * 4)                             # f32 output stream

    out = pl.pallas_call(
        dqn_kernel,
        out_shape=jax.ShapeDtypeStruct((B_pad, d_out), jnp.float32),
        grid=grid,
        in_specs=[
            pl.BlockSpec((TB, d_in), lambda i: (i, 0)),       # x tile, streamed
            pl.BlockSpec((d_in, h1_dim), lambda i: (0, 0)),   # weights stay resident
            pl.BlockSpec((1, h1_dim), lambda i: (0, 0)),
            pl.BlockSpec((h1_dim, h2_dim), lambda i: (0, 0)),
            pl.BlockSpec((1, h2_dim), lambda i: (0, 0)),
            pl.BlockSpec((h2_dim, d_out), lambda i: (0, 0)),
            pl.BlockSpec((1, d_out), lambda i: (0, 0)),
        ],
        out_specs=pl.BlockSpec((TB, d_out), lambda i: (i, 0)),
        compiler_params=pltpu.CompilerParams(
            dimension_semantics=("parallel",),  # v7x: shard batch tiles across both TCs
        ),
        cost_estimate=pl.CostEstimate(
            flops=flops, transcendentals=0, bytes_accessed=bytes_accessed),
    )(xp, w1, b1, w2, b2, w3, b3)

    return out[:B]


def init_params(key, input_dim, output_dim):
    """Deterministic init mimicking PyTorch's default Linear init:
    U(-1/sqrt(fan_in), 1/sqrt(fan_in)) for both weight and bias. W stored as [in, out]."""
    dims = [(input_dim, 128), (128, 256), (256, output_dim)]
    params = []
    for (fan_in, fan_out) in dims:
        key, kw, kb = jax.random.split(key, 3)
        bound = 1.0 / jnp.sqrt(jnp.float32(fan_in))
        w = jax.random.uniform(kw, (fan_in, fan_out), jnp.float32, -bound, bound)
        b = jax.random.uniform(kb, (1, fan_out), jnp.float32, -bound, bound)
        params.extend([w, b])
    return tuple(params)


def dqn_reference_bf16(x, params):
    """Reference emulating the kernel's numerics: bf16 matmul inputs, f32 accumulate."""
    w1, b1, w2, b2, w3, b3 = params
    bf = lambda a: a.astype(jnp.bfloat16).astype(jnp.float32)
    hi = jax.lax.Precision.HIGHEST
    h1 = jnp.maximum(jnp.dot(bf(x), bf(w1), precision=hi) + b1, 0.0)
    h2 = jnp.maximum(jnp.dot(bf(h1), bf(w2), precision=hi) + b2, 0.0)
    return jnp.dot(bf(h2), bf(w3), precision=hi) + b3


def dqn_reference_f32(x, params):
    w1, b1, w2, b2, w3, b3 = params
    hi = jax.lax.Precision.HIGHEST
    h1 = jnp.maximum(jnp.dot(x, w1, precision=hi) + b1, 0.0)
    h2 = jnp.maximum(jnp.dot(h1, w2, precision=hi) + b2, 0.0)
    return jnp.dot(h2, w3, precision=hi) + b3


if __name__ == "__main__":
    # TicTacToe: 9-cell board state in, 9 Q-values out; small batch.
    batch, input_dim, output_dim = 2, 9, 9

    key = jax.random.PRNGKey(0)
    key, kx = jax.random.split(key)
    x = jax.random.normal(kx, (batch, input_dim), jnp.float32)
    params = init_params(key, input_dim, output_dim)

    prepped = prepare_params(params)          # one-time weight prep, amortized
    out = dqn_forward(x, prepped)
    out = jax.block_until_ready(out)

    assert out.shape == (batch, output_dim)

    # Tight check vs. a reference with matching bf16-matmul numerics.
    ref_bf16 = dqn_reference_bf16(x, params)
    assert jnp.allclose(out, ref_bf16, atol=3e-3, rtol=3e-3), "mismatch vs. bf16 reference"

    # Looser sanity check vs. full-f32 math (bf16 rounding only).
    ref_f32 = dqn_reference_f32(x, params)
    assert jnp.allclose(out, ref_f32, atol=5e-2, rtol=5e-2), "mismatch vs. f32 reference"

    print("KERNEL_OK")
</pallas_src>

<mosaic_0001>
module attributes {stable_mosaic.version = 11 : i64} {
  func.func @dqn_kernel(%arg0: i32, %arg1: memref<16x9xbf16, #tpu.memory_space<vmem>>, %arg2: memref<9x128xbf16, #tpu.memory_space<vmem>>, %arg3: memref<1x128xf32, #tpu.memory_space<vmem>>, %arg4: memref<128x256xbf16, #tpu.memory_space<vmem>>, %arg5: memref<1x256xf32, #tpu.memory_space<vmem>>, %arg6: memref<256x9xbf16, #tpu.memory_space<vmem>>, %arg7: memref<1x9xf32, #tpu.memory_space<vmem>>, %arg8: memref<16x9xf32, #tpu.memory_space<vmem>>) attributes {dimension_semantics = [#tpu.dimension_semantics<parallel>], iteration_bounds = array<i64: 1>, scalar_prefetch = 0 : i64, scratch_operands = 0 : i64, tpu.core_type = #tpu.core_type<tc>, window_params = [{transform_indices = @transform_0, window_bounds = array<i64: 16, 9>}, {pipeline_mode = #tpu.pipeline_mode<synchronous>, transform_indices = @transform_1, window_bounds = array<i64: 9, 128>}, {pipeline_mode = #tpu.pipeline_mode<synchronous>, transform_indices = @transform_2, window_bounds = array<i64: 1, 128>}, {pipeline_mode = #tpu.pipeline_mode<synchronous>, transform_indices = @transform_3, window_bounds = array<i64: 128, 256>}, {pipeline_mode = #tpu.pipeline_mode<synchronous>, transform_indices = @transform_4, window_bounds = array<i64: 1, 256>}, {pipeline_mode = #tpu.pipeline_mode<synchronous>, transform_indices = @transform_5, window_bounds = array<i64: 256, 9>}, {pipeline_mode = #tpu.pipeline_mode<synchronous>, transform_indices = @transform_6, window_bounds = array<i64: 1, 9>}, {transform_indices = @transform_7, window_bounds = array<i64: 16, 9>}]} {
    %c0 = arith.constant 0 : index
    %c0_0 = arith.constant 0 : index
    %0 = vector.load %arg1[%c0, %c0_0] : memref<16x9xbf16, #tpu.memory_space<vmem>>, vector<16x9xbf16>
    %c0_1 = arith.constant 0 : index
    %c0_2 = arith.constant 0 : index
    %1 = vector.load %arg2[%c0_1, %c0_2] : memref<9x128xbf16, #tpu.memory_space<vmem>>, vector<9x128xbf16>
    %cst = arith.constant dense<0.000000e+00> : vector<16x128xf32>
    %2 = tpu.matmul %0, %1, %cst {dimension_numbers = #tpu.dot_dimension_numbers<[1], [0], [0], [1], [0, 0, 1, 1], [], []>} : vector<16x9xbf16>, vector<9x128xbf16>, vector<16x128xf32> -> vector<16x128xf32>
    %c0_3 = arith.constant 0 : index
    %c0_4 = arith.constant 0 : index
    %3 = vector.load %arg3[%c0_3, %c0_4] : memref<1x128xf32, #tpu.memory_space<vmem>>, vector<1x128xf32>
    %4 = vector.broadcast %3 : vector<1x128xf32> to vector<16x128xf32>
    %5 = arith.addf %2, %4 : vector<16x128xf32>
    %cst_5 = arith.constant 0.000000e+00 : f32
    %6 = vector.broadcast %cst_5 : f32 to vector<16x128xf32>
    %7 = arith.maximumf %5, %6 : vector<16x128xf32>
    %8 = arith.truncf %7 : vector<16x128xf32> to vector<16x128xbf16>
    %c0_6 = arith.constant 0 : index
    %c0_7 = arith.constant 0 : index
    %9 = vector.load %arg4[%c0_6, %c0_7] : memref<128x256xbf16, #tpu.memory_space<vmem>>, vector<128x256xbf16>
    %cst_8 = arith.constant dense<0.000000e+00> : vector<16x256xf32>
    %10 = tpu.matmul %8, %9, %cst_8 {dimension_numbers = #tpu.dot_dimension_numbers<[1], [0], [0], [1], [0, 0, 1, 1], [], []>} : vector<16x128xbf16>, vector<128x256xbf16>, vector<16x256xf32> -> vector<16x256xf32>
    %c0_9 = arith.constant 0 : index
    %c0_10 = arith.constant 0 : index
    %11 = vector.load %arg5[%c0_9, %c0_10] : memref<1x256xf32, #tpu.memory_space<vmem>>, vector<1x256xf32>
    %12 = vector.broadcast %11 : vector<1x256xf32> to vector<16x256xf32>
    %13 = arith.addf %10, %12 : vector<16x256xf32>
    %cst_11 = arith.constant 0.000000e+00 : f32
    %14 = vector.broadcast %cst_11 : f32 to vector<16x256xf32>
    %15 = arith.maximumf %13, %14 : vector<16x256xf32>
    %16 = arith.truncf %15 : vector<16x256xf32> to vector<16x256xbf16>
    %c0_12 = arith.constant 0 : index
    %c0_13 = arith.constant 0 : index
    %17 = vector.load %arg6[%c0_12, %c0_13] : memref<256x9xbf16, #tpu.memory_space<vmem>>, vector<256x9xbf16>
    %cst_14 = arith.constant dense<0.000000e+00> : vector<16x9xf32>
    %18 = tpu.matmul %16, %17, %cst_14 {dimension_numbers = #tpu.dot_dimension_numbers<[1], [0], [0], [1], [0, 0, 1, 1], [], []>} : vector<16x256xbf16>, vector<256x9xbf16>, vector<16x9xf32> -> vector<16x9xf32>
    %c0_15 = arith.constant 0 : index
    %c0_16 = arith.constant 0 : index
    %19 = vector.load %arg7[%c0_15, %c0_16] : memref<1x9xf32, #tpu.memory_space<vmem>>, vector<1x9xf32>
    %20 = vector.broadcast %19 : vector<1x9xf32> to vector<16x9xf32>
    %21 = arith.addf %18, %20 : vector<16x9xf32>
    %c0_17 = arith.constant 0 : index
    %c0_18 = arith.constant 0 : index
    %22 = vector.load %arg8[%c0_17, %c0_18] : memref<16x9xf32, #tpu.memory_space<vmem>>, vector<16x9xf32>
    tpu.vector_store %arg8[%c0_17, %c0_18], %21 {strides = array<i32>} : memref<16x9xf32, #tpu.memory_space<vmem>>, vector<16x9xf32>,
    return
  }
  func.func @transform_0(%arg0: i32) -> (i32, i32) {
    %c0_i32 = arith.constant 0 : i32
    %c0_i32_0 = arith.constant 0 : i32
    return %arg0, %c0_i32 : i32, i32
  }
  func.func @transform_1(%arg0: i32) -> (i32, i32) {
    %c0_i32 = arith.constant 0 : i32
    %c0_i32_0 = arith.constant 0 : i32
    %c0_i32_1 = arith.constant 0 : i32
    return %c0_i32, %c0_i32_0 : i32, i32
  }
  func.func @transform_2(%arg0: i32) -> (i32, i32) {
    %c0_i32 = arith.constant 0 : i32
    %c0_i32_0 = arith.constant 0 : i32
    %c0_i32_1 = arith.constant 0 : i32
    return %c0_i32, %c0_i32_0 : i32, i32
  }
  func.func @transform_3(%arg0: i32) -> (i32, i32) {
    %c0_i32 = arith.constant 0 : i32
    %c0_i32_0 = arith.constant 0 : i32
    %c0_i32_1 = arith.constant 0 : i32
    return %c0_i32, %c0_i32_0 : i32, i32
  }
  func.func @transform_4(%arg0: i32) -> (i32, i32) {
    %c0_i32 = arith.constant 0 : i32
    %c0_i32_0 = arith.constant 0 : i32
    %c0_i32_1 = arith.constant 0 : i32
    return %c0_i32, %c0_i32_0 : i32, i32
  }
  func.func @transform_5(%arg0: i32) -> (i32, i32) {
    %c0_i32 = arith.constant 0 : i32
    %c0_i32_0 = arith.constant 0 : i32
    %c0_i32_1 = arith.constant 0 : i32
    return %c0_i32, %c0_i32_0 : i32, i32
  }
  func.func @transform_6(%arg0: i32) -> (i32, i32) {
    %c0_i32 = arith.constant 0 : i32
    %c0_i32_0 = arith.constant 0 : i32
    %c0_i32_1 = arith.constant 0 : i32
    return %c0_i32, %c0_i32_0 : i32, i32
  }
  func.func @transform_7(%arg0: i32) -> (i32, i32) {
    %c0_i32 = arith.constant 0 : i32
    %c0_i32_0 = arith.constant 0 : i32
    return %arg0, %c0_i32 : i32, i32
  }
}

</mosaic_0001>

<llo_original>
// kernel: dqn_forward.1
$region0: #{dqn_forward.1}
  #allocation0 [shape = 'u32[]', space=smem, size = 0x4, offset = 0x4, fixed_abs, tag = 'smem constant byte address 0x4 - core index']
  #allocation1 [shape = 'u32[144,128]{1,0:T(1,128)}', space=vmem, size = 0x12000, scoped, tag = 'internal scratch']
  %s0 = inlined_call_operand.vmem [shape: bf16[16,9], index: 0, kind: input, shape index: {}]
  %s1 = inlined_call_operand.vmem [shape: bf16[9,128], index: 1, kind: input, shape index: {}]
  %s2 = inlined_call_operand.vmem [shape: f32[1,128], index: 2, kind: input, shape index: {}]
  %s3 = inlined_call_operand.vmem [shape: bf16[128,256], index: 3, kind: input, shape index: {}]
  %s4 = inlined_call_operand.vmem [shape: f32[1,256], index: 4, kind: input, shape index: {}]
  %s5 = inlined_call_operand.vmem [shape: bf16[256,9], index: 5, kind: input, shape index: {}]
  %s6 = inlined_call_operand.vmem [shape: f32[1,9], index: 6, kind: input, shape index: {}]
  %s7 = inlined_call_operand.vmem [shape: f32[16,9], index: 7, kind: output, shape index: {}]
  %s8 = sld [smem:[#allocation0]]
  $region38: #{dqn_forward.1} parent=0
    _
  %s10 = ssub.s32 1, %s8
  %s11 = scalar_select 0, %s10, %s8
  // Predicated region
  $region2: #{dqn_forward.1} parent=0 // pred_check
    _
  $region3: #{dqn_forward.1} parent=0 // pred_check_branch
    %13 = sbr.rel (0) target = $region5
  $region4: #{dqn_forward.1} parent=0 // pred_region
    _
  $region5: #{dqn_forward.1} parent=0 // pred_fallthru
    _
  // Predicated region
  $region6: #{dqn_forward.1} parent=0 // pred_check
    _
  $region7: #{dqn_forward.1} parent=0 // pred_check_branch
    %15 = sbr.rel (0) target = $region9
  $region8: #{dqn_forward.1} parent=0 // pred_region
    _
  $region9: #{dqn_forward.1} parent=0 // pred_fallthru
    _
  // Predicated region
  $region10: #{dqn_forward.1} parent=0 // pred_check
    _
  $region11: #{dqn_forward.1} parent=0 // pred_check_branch
    %17 = sbr.rel (0) target = $region13
  $region12: #{dqn_forward.1} parent=0 // pred_region
    _
  $region13: #{dqn_forward.1} parent=0 // pred_fallthru
    _
  // Predicated region
  $region14: #{dqn_forward.1} parent=0 // pred_check
    _
  $region15: #{dqn_forward.1} parent=0 // pred_check_branch
    %19 = sbr.rel (0) target = $region17
  $region16: #{dqn_forward.1} parent=0 // pred_region
    _
  $region17: #{dqn_forward.1} parent=0 // pred_fallthru
    _
  // Predicated region
  $region18: #{dqn_forward.1} parent=0 // pred_check
    _
  $region19: #{dqn_forward.1} parent=0 // pred_check_branch
    %21 = sbr.rel (0) target = $region21
  $region20: #{dqn_forward.1} parent=0 // pred_region
    _
  $region21: #{dqn_forward.1} parent=0 // pred_fallthru
    _
  // Predicated region
  $region22: #{dqn_forward.1} parent=0 // pred_check
    _
  $region23: #{dqn_forward.1} parent=0 // pred_check_branch
    %23 = sbr.rel (0) target = $region25
  $region24: #{dqn_forward.1} parent=0 // pred_region
    _
  $region25: #{dqn_forward.1} parent=0 // pred_fallthru
    _
  // Predicated region
  $region26: #{dqn_forward.1} parent=0 // pred_check
    _
  $region27: #{dqn_forward.1} parent=0 // pred_check_branch
    %25 = sbr.rel (0) target = $region29
  $region28: #{dqn_forward.1} parent=0 // pred_region
    _
  $region29: #{dqn_forward.1} parent=0 // pred_fallthru
    _
  %v27 = vld [vmem:[%s0] sm:$0xf]
  %v28 = vld [vmem:[%s0 + $0x4] sm:$0xf]
  %v29 = vld [vmem:[%s1] sm:$0xf]
  %v30 = vld [vmem:[%s1 + $0x4] sm:$0x1]
  %v31 = vld [vmem:[%s2] sm:$0x1]
  %v33 = vlaneseq
  %v34 = vshrl.u32 %v33, 7
  %v35 = vsub.s32 0, %v34
  %v36 = vrot.slane %v31, %v35
  %v40 = vunpack.c.l.b16 %v27
  %v41 = vunpack.c.l.b16 %v28
  %v42 = vpack.c.b16 %v41, %v40
  %v45 = vunpack.c.l.b16 %v29
  %v46 = vunpack.c.l.b16 %v30
  %v47 = vpack.c.b16 %v46, %v45
  %vm48 = vcmask 72704
  %v50 = vsel %vm48, %v42, 0
  %vm52 = vcmask 1043456
  %vm53 = vcmask 1044480
  %v54 = vsel %vm52, 4294967295, 65535
  %v55 = vsel %vm53, %v54, 0
  %v57 = vand.u32 %v47, %v55
  %59 = vmatprep.subr.bf16.mxu0 0
  %60 = vmatpush1.bf16.msra.mxu0 0
  %61 = vmatprep.subr.bf16.mxu0 0
  %62 = vmatpush1.bf16.msra.mxu0 0
  %63 = vmatprep.subr.bf16.mxu0 0
  %64 = vmatpush1.bf16.msra.mxu0 0
  %65 = vmatprep.subr.bf16.mxu0 0
  %66 = vmatpush1.bf16.msra.mxu0 0
  %67 = vmatprep.subr.bf16.mxu0 0
  %68 = vmatpush1.bf16.msra.mxu0 0
  %69 = vmatprep.subr.bf16.mxu0 0
  %70 = vmatpush1.bf16.msra.mxu0 0
  %71 = vmatprep.subr.bf16.mxu0 0
  %72 = vmatpush1.bf16.msra.mxu0 0
  %73 = vmatprep.subr.bf16.mxu0 0
  %74 = vmatpush1.bf16.msra.mxu0 %v57
  %75 = vmatprep.subr.bf16.mxu0 0
  %76 = vmatpush2.bf16.msra.mxu0 0
  %77 = vmatprep.subr.bf16.mxu0 0
  %78 = vmatpush2.bf16.msra.mxu0 0
  %79 = vmatprep.subr.bf16.mxu0 0
  %80 = vmatpush2.bf16.msra.mxu0 0
  %81 = vmatprep.subr.bf16.mxu0 0
  %82 = vmatpush2.bf16.msra.mxu0 0
  %83 = vmatprep.subr.bf16.mxu0 0
  %84 = vmatpush2.bf16.msra.mxu0 0
  %85 = vmatprep.subr.bf16.mxu0 0
  %86 = vmatpush2.bf16.msra.mxu0 0
  %87 = vmatprep.subr.bf16.mxu0 0
  %88 = vmatpush2.bf16.msra.mxu0 0
  %89 = vmatprep.subr.bf16.mxu0 0
  %90 = vmatpush2.bf16.msra.mxu0 0
  %91 = vmatprep.mubr.bf16.mxu0 0
  %92 = vmatmul.mubr.bf16.gmra.mxu0 %v50
  %v93 = vpop.f32.mrf.mxu0
  %v94 = vadd.f32 %v36, %v93
  %v95 = vpop.f32.mrf.mxu0
  %v96 = vpop.f32.mrf.mxu0
  %v97 = vadd.f32 %v36, %v96
  %v98 = vpop.f32.mrf.mxu0
  %99 = vdwg.mxu0
  %v100 = vmax.f32 %v94, 0.0
  %v101 = vmax.f32 %v97, 0.0
  %v102 = vpack.c.bf16 %v101, %v100
  %v103 = vld [vmem:[%s3] sm:$0xff]
  %v104 = vld [vmem:[%s3 + $0x8] sm:$0xff]
  %v105 = vld [vmem:[%s3 + $0x10] sm:$0xff]
  %v106 = vld [vmem:[%s3 + $0x18] sm:$0xff]
  %v107 = vld [vmem:[%s3 + $0x20] sm:$0xff]
  %v108 = vld [vmem:[%s3 + $0x28] sm:$0xff]
  %v109 = vld [vmem:[%s3 + $0x30] sm:$0xff]
  %v110 = vld [vmem:[%s3 + $0x38] sm:$0xff]
  %v111 = vld [vmem:[%s3 + $0x40] sm:$0xff]
  %v112 = vld [vmem:[%s3 + $0x48] sm:$0xff]
  %v113 = vld [vmem:[%s3 + $0x50] sm:$0xff]
  %v114 = vld [vmem:[%s3 + $0x58] sm:$0xff]
  %v115 = vld [vmem:[%s3 + $0x60] sm:$0xff]
  %v116 = vld [vmem:[%s3 + $0x68] sm:$0xff]
  %v117 = vld [vmem:[%s3 + $0x70] sm:$0xff]
  %v118 = vld [vmem:[%s3 + $0x78] sm:$0xff]
  %v119 = vld [vmem:[%s4] sm:$0x3]
  %v121 = vlaneseq
  %v122 = vshrl.u32 %v121, 7
  %v123 = vsub.s32 0, %v122
  %v124 = vrot.slane %v119, %v123
  %v125 = vlaneseq
  %v126 = vshrl.u32 %v125, 7
  %v127 = vsub.s32 1, %v126
  %v128 = vrot.slane %v119, %v127
  %v147 = vunpack.c.l.b16 %v103
  %v148 = vunpack.c.h.b16 %v103
  %v149 = vunpack.c.l.b16 %v104
  %v150 = vunpack.c.h.b16 %v104
  %v151 = vunpack.c.l.b16 %v105
  %v152 = vunpack.c.h.b16 %v105
  %v153 = vunpack.c.l.b16 %v106
  %v154 = vunpack.c.h.b16 %v106
  %v155 = vunpack.c.l.b16 %v107
  %v156 = vunpack.c.h.b16 %v107
  %v157 = vunpack.c.l.b16 %v108
  %v158 = vunpack.c.h.b16 %v108
  %v159 = vunpack.c.l.b16 %v109
  %v160 = vunpack.c.h.b16 %v109
  %v161 = vunpack.c.l.b16 %v110
  %v162 = vunpack.c.h.b16 %v110
  %v163 = vunpack.c.l.b16 %v111
  %v164 = vunpack.c.h.b16 %v111
  %v165 = vunpack.c.l.b16 %v112
  %v166 = vunpack.c.h.b16 %v112
  %v167 = vunpack.c.l.b16 %v113
  %v168 = vunpack.c.h.b16 %v113
  %v169 = vunpack.c.l.b16 %v114
  %v170 = vunpack.c.h.b16 %v114
  %v171 = vunpack.c.l.b16 %v115
  %v172 = vunpack.c.h.b16 %v115
  %v173 = vunpack.c.l.b16 %v116
  %v174 = vunpack.c.h.b16 %v116
  %v175 = vunpack.c.l.b16 %v117
  %v176 = vunpack.c.h.b16 %v117
  %v177 = vunpack.c.l.b16 %v118
  %v178 = vunpack.c.h.b16 %v118
  %v179 = vpack.c.b16 %v149, %v147
  %v180 = vpack.c.b16 %v150, %v148
  %v181 = vpack.c.b16 %v153, %v151
  %v182 = vpack.c.b16 %v154, %v152
  %v183 = vpack.c.b16 %v157, %v155
  %v184 = vpack.c.b16 %v158, %v156
  %v185 = vpack.c.b16 %v161, %v159
  %v186 = vpack.c.b16 %v162, %v160
  %v187 = vpack.c.b16 %v165, %v163
  %v188 = vpack.c.b16 %v166, %v164
  %v189 = vpack.c.b16 %v169, %v167
  %v190 = vpack.c.b16 %v170, %v168
  %v191 = vpack.c.b16 %v173, %v171
  %v192 = vpack.c.b16 %v174, %v172
  %v193 = vpack.c.b16 %v177, %v175
  %v194 = vpack.c.b16 %v178, %v176
  %211 = vmatprep.subr.bf16.mxu0 %v194
  %212 = vmatpush1.bf16.msra.mxu0 %v193
  %213 = vmatprep.subr.bf16.mxu0 %v192
  %214 = vmatpush1.bf16.msra.mxu0 %v191
  %215 = vmatprep.subr.bf16.mxu0 %v190
  %216 = vmatpush1.bf16.msra.mxu0 %v189
  %217 = vmatprep.subr.bf16.mxu0 %v188
  %218 = vmatpush1.bf16.msra.mxu0 %v187
  %219 = vmatprep.subr.bf16.mxu0 %v186
  %220 = vmatpush1.bf16.msra.mxu0 %v185
  %221 = vmatprep.subr.bf16.mxu0 %v184
  %222 = vmatpush1.bf16.msra.mxu0 %v183
  %223 = vmatprep.subr.bf16.mxu0 %v182
  %224 = vmatpush1.bf16.msra.mxu0 %v181
  %225 = vmatprep.subr.bf16.mxu0 %v180
  %226 = vmatpush1.bf16.msra.mxu0 %v179
  %227 = vmatprep.subr.bf16.mxu0 0
  %228 = vmatpush2.bf16.msra.mxu0 0
  %229 = vmatprep.subr.bf16.mxu0 0
  %230 = vmatpush2.bf16.msra.mxu0 0
  %231 = vmatprep.subr.bf16.mxu0 0
  %232 = vmatpush2.bf16.msra.mxu0 0
  %233 = vmatprep.subr.bf16.mxu0 0
  %234 = vmatpush2.bf16.msra.mxu0 0
  %235 = vmatprep.subr.bf16.mxu0 0
  %236 = vmatpush2.bf16.msra.mxu0 0
  %237 = vmatprep.subr.bf16.mxu0 0
  %238 = vmatpush2.bf16.msra.mxu0 0
  %239 = vmatprep.subr.bf16.mxu0 0
  %240 = vmatpush2.bf16.msra.mxu0 0
  %241 = vmatprep.subr.bf16.mxu0 0
  %242 = vmatpush2.bf16.msra.mxu0 0
  %243 = vmatprep.mubr.bf16.mxu0 0
  %244 = vmatmul.mubr.bf16.gmra.mxu0 %v102
  %v245 = vpop.f32.mrf.mxu0
  %v246 = vadd.f32 %v124, %v245
  %v247 = vpop.f32.mrf.mxu0
  %v248 = vadd.f32 %v128, %v247
  %v249 = vpop.f32.mrf.mxu0
  %v250 = vadd.f32 %v124, %v249
  %v251 = vpop.f32.mrf.mxu0
  %v252 = vadd.f32 %v128, %v251
  %253 = vdwg.mxu0
  %v254 = vmax.f32 %v246, 0.0
  %v255 = vmax.f32 %v248, 0.0
  %v256 = vmax.f32 %v250, 0.0
  %v257 = vmax.f32 %v252, 0.0
  %v258 = vpack.c.bf16 %v256, %v254
  %v259 = vpack.c.bf16 %v257, %v255
  %v260 = vld [vmem:[%s5] sm:$0xf]
  %v261 = vld [vmem:[%s5 + $0x4] sm:$0xf]
  %v262 = vld [vmem:[%s5 + $0x8] sm:$0xf]
  %v263 = vld [vmem:[%s5 + $0xc] sm:$0xf]
  %v264 = vld [vmem:[%s5 + $0x10] sm:$0xf]
  %v265 = vld [vmem:[%s5 + $0x14] sm:$0xf]
  %v266 = vld [vmem:[%s5 + $0x18] sm:$0xf]
  %v267 = vld [vmem:[%s5 + $0x1c] sm:$0xf]
  %v268 = vld [vmem:[%s5 + $0x20] sm:$0xf]
  %v269 = vld [vmem:[%s5 + $0x24] sm:$0xf]
  %v270 = vld [vmem:[%s5 + $0x28] sm:$0xf]
  %v271 = vld [vmem:[%s5 + $0x2c] sm:$0xf]
  %v272 = vld [vmem:[%s5 + $0x30] sm:$0xf]
  %v273 = vld [vmem:[%s5 + $0x34] sm:$0xf]
  %v274 = vld [vmem:[%s5 + $0x38] sm:$0xf]
  %v275 = vld [vmem:[%s5 + $0x3c] sm:$0xf]
  %v276 = vld [vmem:[%s5 + $0x40] sm:$0xf]
  %v277 = vld [vmem:[%s5 + $0x44] sm:$0xf]
  %v278 = vld [vmem:[%s5 + $0x48] sm:$0xf]
  %v279 = vld [vmem:[%s5 + $0x4c] sm:$0xf]
  %v280 = vld [vmem:[%s5 + $0x50] sm:$0xf]
  %v281 = vld [vmem:[%s5 + $0x54] sm:$0xf]
  %v282 = vld [vmem:[%s5 + $0x58] sm:$0xf]
  %v283 = vld [vmem:[%s5 + $0x5c] sm:$0xf]
  %v284 = vld [vmem:[%s5 + $0x60] sm:$0xf]
  %v285 = vld [vmem:[%s5 + $0x64] sm:$0xf]
  %v286 = vld [vmem:[%s5 + $0x68] sm:$0xf]
  %v287 = vld [vmem:[%s5 + $0x6c] sm:$0xf]
  %v288 = vld [vmem:[%s5 + $0x70] sm:$0xf]
  %v289 = vld [vmem:[%s5 + $0x74] sm:$0xf]
  %v290 = vld [vmem:[%s5 + $0x78] sm:$0xf]
  %v291 = vld [vmem:[%s5 + $0x7c] sm:$0xf]
  %v292 = vld [vmem:[%s6] sm:$0x1]
  %v294 = vlaneseq
  %v295 = vshrl.u32 %v294, 7
  %v296 = vsub.s32 0, %v295
  %v297 = vrot.slane %v292, %v296
  %v331 = vunpack.c.l.b16 %v260
  %v332 = vunpack.c.l.b16 %v261
  %v333 = vunpack.c.l.b16 %v262
  %v334 = vunpack.c.l.b16 %v263
  %v335 = vunpack.c.l.b16 %v264
  %v336 = vunpack.c.l.b16 %v265
  %v337 = vunpack.c.l.b16 %v266
  %v338 = vunpack.c.l.b16 %v267
  %v339 = vunpack.c.l.b16 %v268
  %v340 = vunpack.c.l.b16 %v269
  %v341 = vunpack.c.l.b16 %v270
  %v342 = vunpack.c.l.b16 %v271
  %v343 = vunpack.c.l.b16 %v272
  %v344 = vunpack.c.l.b16 %v273
  %v345 = vunpack.c.l.b16 %v274
  %v346 = vunpack.c.l.b16 %v275
  %v347 = vunpack.c.l.b16 %v276
  %v348 = vunpack.c.l.b16 %v277
  %v349 = vunpack.c.l.b16 %v278
  %v350 = vunpack.c.l.b16 %v279
  %v351 = vunpack.c.l.b16 %v280
  %v352 = vunpack.c.l.b16 %v281
  %v353 = vunpack.c.l.b16 %v282
  %v354 = vunpack.c.l.b16 %v283
  %v355 = vunpack.c.l.b16 %v284
  %v356 = vunpack.c.l.b16 %v285
  %v357 = vunpack.c.l.b16 %v286
  %v358 = vunpack.c.l.b16 %v287
  %v359 = vunpack.c.l.b16 %v288
  %v360 = vunpack.c.l.b16 %v289
  %v361 = vunpack.c.l.b16 %v290
  %v362 = vunpack.c.l.b16 %v291
  %v363 = vpack.c.b16 %v332, %v331
  %v364 = vpack.c.b16 %v334, %v333
  %v365 = vpack.c.b16 %v336, %v335
  %v366 = vpack.c.b16 %v338, %v337
  %v367 = vpack.c.b16 %v340, %v339
  %v368 = vpack.c.b16 %v342, %v341
  %v369 = vpack.c.b16 %v344, %v343
  %v370 = vpack.c.b16 %v346, %v345
  %v371 = vpack.c.b16 %v348, %v347
  %v372 = vpack.c.b16 %v350, %v349
  %v373 = vpack.c.b16 %v352, %v351
  %v374 = vpack.c.b16 %v354, %v353
  %v375 = vpack.c.b16 %v356, %v355
  %v376 = vpack.c.b16 %v358, %v357
  %v377 = vpack.c.b16 %v360, %v359
  %v378 = vpack.c.b16 %v362, %v361
  %395 = vmatprep.subr.bf16.mxu0 0
  %396 = vmatpush1.bf16.msra.mxu0 %v370
  %397 = vmatprep.subr.bf16.mxu0 0
  %398 = vmatpush1.bf16.msra.mxu0 %v369
  %399 = vmatprep.subr.bf16.mxu0 0
  %400 = vmatpush1.bf16.msra.mxu0 %v368
  %401 = vmatprep.subr.bf16.mxu0 0
  %402 = vmatpush1.bf16.msra.mxu0 %v367
  %403 = vmatprep.subr.bf16.mxu0 0
  %404 = vmatpush1.bf16.msra.mxu0 %v366
  %405 = vmatprep.subr.bf16.mxu0 0
  %406 = vmatpush1.bf16.msra.mxu0 %v365
  %407 = vmatprep.subr.bf16.mxu0 0
  %408 = vmatpush1.bf16.msra.mxu0 %v364
  %409 = vmatprep.subr.bf16.mxu0 0
  %410 = vmatpush1.bf16.msra.mxu0 %v363
  %411 = vmatprep.subr.bf16.mxu0 0
  %412 = vmatpush2.bf16.msra.mxu0 %v378
  %413 = vmatprep.subr.bf16.mxu0 0
  %414 = vmatpush2.bf16.msra.mxu0 %v377
  %415 = vmatprep.subr.bf16.mxu0 0
  %416 = vmatpush2.bf16.msra.mxu0 %v376
  %417 = vmatprep.subr.bf16.mxu0 0
  %418 = vmatpush2.bf16.msra.mxu0 %v375
  %419 = vmatprep.subr.bf16.mxu0 0
  %420 = vmatpush2.bf16.msra.mxu0 %v374
  %421 = vmatprep.subr.bf16.mxu0 0
  %422 = vmatpush2.bf16.msra.mxu0 %v373
  %423 = vmatprep.subr.bf16.mxu0 0
  %424 = vmatpush2.bf16.msra.mxu0 %v372
  %425 = vmatprep.subr.bf16.mxu0 0
  %426 = vmatpush2.bf16.msra.mxu0 %v371
  %427 = vmatprep.mubr.bf16.mxu0 %v259
  %428 = vmatmul.mubr.bf16.gmra.mxu0 %v258
  %v429 = vpop.f32.mrf.mxu0
  %v430 = vadd.f32 %v297, %v429
  %v431 = vpop.f32.mrf.mxu0
  %v432 = vpop.f32.mrf.mxu0
  %v433 = vadd.f32 %v297, %v432
  %v434 = vpop.f32.mrf.mxu0
  %435 = vdwg.mxu0
  %436 = vst.msk [vmem:[%s7] sm:$0xff] %vm48, %v430
  %437 = vst.msk [vmem:[%s7 + $0x8] sm:$0xff] %vm48, %v433
  // Predicated region
  $region30: #{dqn_forward.1} parent=0 // pred_check
    _
  $region31: #{dqn_forward.1} parent=0 // pred_check_branch
    %439 = sbr.rel (0) target = $region33
  $region32: #{dqn_forward.1} parent=0 // pred_region
    _
  $region33: #{dqn_forward.1} parent=0 // pred_fallthru
    _
  // Predicated region
  $region34: #{dqn_forward.1} parent=0 // pred_check
    _
  $region35: #{dqn_forward.1} parent=0 // pred_check_branch
    %441 = sbr.rel (0) target = $region37
  $region36: #{dqn_forward.1} parent=0 // pred_region
    _
  $region37: #{dqn_forward.1} parent=0 // pred_fallthru
    _

</llo_original>
